<compile_context>
chip_gen: v6e
topology: v6e:2x2x1
jax: 0.10.0
libtpu: 0.0.40
codegen_flags: <defaults>
</compile_context>

<pallas_src>
import functools

import jax
import jax.numpy as jnp
from jax import lax
from jax.experimental import pallas as pl
from jax.experimental.pallas import tpu as pltpu

_LANE = 128


def _cdiv(a, b):
    return -(-a // b)


def _pow2_floor(x):
    return 1 << (max(int(x), 1).bit_length() - 1)


def _fold_lane_groups(g):
    """(1, n*128) f32 -> (1, 128) by summing 128-lane groups (n power of two).

    Tree-style halving: log2(n) traced ops, short dependency chains, all slices
    are static and 128-aligned (no relayout).
    """
    n = g.shape[-1] // _LANE
    while n > 1:
        n //= 2
        g = g[:, : n * _LANE] + g[:, n * _LANE : 2 * n * _LANE]
    return g


def _untargeted_loss_kernel(z_ref, l_ref, out_ref, *, hw):
    # z_ref:   (1, C, TILE)    z in its native dtype
    # l_ref:   (1, 1, TILE)    fused label stream: l[b,p] if condition else -1
    # out_ref: (1, 1, 8, 128)  f32 partial sums (row 0 holds this block's partial)
    C = z_ref.shape[1]
    tile = z_ref.shape[2]

    lbl = l_ref[0].astype(jnp.int32)                                  # (1, TILE)

    # Ragged tail: lanes past HW in the last block hold undefined data; force
    # their label to -1 so no channel ever matches. Traced only when needed.
    if hw % tile != 0:
        pos = (pl.program_id(1) * tile
               + lax.broadcasted_iota(jnp.int32, (1, tile), 1))
        lbl = jnp.where(pos < hw, lbl, jnp.full_like(lbl, -1))

    # One-hot channel select in sublane-dense chunks of <= 8 channels.
    # Select in native dtype; cast to f32 only for the accumulation.
    g = jnp.zeros((1, tile), jnp.float32)
    for c0 in range(0, C, 8):
        c1 = min(c0 + 8, C)
        zc = z_ref[0, c0:c1, :]                                       # (cc, TILE)
        ci = c0 + lax.broadcasted_iota(jnp.int32, (c1 - c0, tile), 0)
        selc = jnp.where(ci == lbl, zc, jnp.zeros_like(zc))           # native dtype
        g = g + jnp.sum(selc.astype(jnp.float32), axis=0, keepdims=True)

    part = _fold_lane_groups(g)                                       # (1, 128)

    row = lax.broadcasted_iota(jnp.int32, (8, _LANE), 0)
    out_ref[0, 0] = jnp.where(row == 0, part, jnp.zeros((8, _LANE), jnp.float32))


def untargeted_loss(z, condition, l, *, target_block_bytes=2 * 1024 * 1024):
    """z: (B,C,H,W), condition: (B,H,W) bool, l: (B,H,W) int -> scalar loss."""
    B, C, H, W = z.shape
    HW = H * W

    # ---- Fuse condition into the labels: one narrow HBM input stream. ----
    lbl_dtype = jnp.int8 if C <= 127 else jnp.int32
    lm = jnp.where(condition.astype(bool), l.astype(jnp.int32), -1).astype(lbl_dtype)

    z2 = z.reshape(B, C, HW)            # free contiguous reshape, never padded
    lm = lm.reshape(B, 1, HW)

    hw_eff = HW
    if HW < _LANE:                      # degenerate tiny-spatial case only
        pad = _LANE - HW
        z2 = jnp.pad(z2, ((0, 0), (0, 0), (0, pad)))
        lm = jnp.pad(lm, ((0, 0), (0, 0), (0, pad)), constant_values=-1)
        hw_eff = _LANE

    # ---- Spatial tile: power-of-two 128-lane groups, sized so one z block is
    #      ~target_block_bytes of HBM traffic, never exceeding the array. ----
    z_bytes = jnp.dtype(z.dtype).itemsize
    per_row = C * _LANE * z_bytes                       # z bytes per 128-lane group
    s_budget = _pow2_floor(max(1, target_block_bytes // per_row))
    s_fit = _pow2_floor(max(1, hw_eff // _LANE))        # keep block inside the array
    s_tile = min(s_budget, s_fit, 1024)

    # v7x megacore: prefer >= ~8 parallel grid steps, but keep blocks >= 256 KiB.
    min_block_bytes = 256 * 1024
    while (s_tile > 8
           and B * _cdiv(hw_eff, s_tile * _LANE) < 8
           and (s_tile // 2) * per_row >= min_block_bytes):
        s_tile //= 2

    tile = s_tile * _LANE
    n_t = _cdiv(hw_eff, tile)

    # ---- VMEM budget: double-buffered blocks + f32 temporaries, capped at 32 MiB
    #      (headroom on v7x's 64 MiB VMEM; above v5e's 16 MiB scoped default). ----
    c_pad = _cdiv(C, 8) * 8
    lbl_bytes = jnp.dtype(lbl_dtype).itemsize
    need = (2 * (c_pad * tile * z_bytes + 8 * tile * lbl_bytes + 8 * _LANE * 4)
            + 3 * 8 * tile * 4 + (2 << 20))
    vmem_limit = int(min(32 << 20, max(16 << 20, need)))

    kernel = functools.partial(_untargeted_loss_kernel, hw=HW)

    out = pl.pallas_call(
        kernel,
        out_shape=jax.ShapeDtypeStruct((B, n_t, 8, _LANE), jnp.float32),
        grid=(B, n_t),
        in_specs=[
            pl.BlockSpec((1, C, tile), lambda b, t: (b, 0, t)),
            pl.BlockSpec((1, 1, tile), lambda b, t: (b, 0, t)),
        ],
        out_specs=pl.BlockSpec((1, 1, 8, _LANE), lambda b, t: (b, t, 0, 0)),
        compiler_params=pltpu.CompilerParams(
            dimension_semantics=("parallel", "parallel"),
            vmem_limit_bytes=vmem_limit,
        ),
    )(z2, lm)

    # Tiny final cross-block reduce outside the kernel.
    return jnp.sum(out).astype(z.dtype)


if __name__ == "__main__":
    key = jax.random.PRNGKey(0)
    kz, kc, kl = jax.random.split(key, 3)

    B, C, H, W = 2, 4, 16, 16
    z = jax.random.normal(kz, (B, C, H, W), dtype=jnp.float32)
    condition = jax.random.bernoulli(kc, 0.5, (B, H, W))
    l = jax.random.randint(kl, (B, H, W), 0, C, dtype=jnp.int32)

    loss = jax.jit(untargeted_loss)(z, condition, l)
    jax.block_until_ready(loss)

    # Pure-JAX reference check.
    z_sel = jnp.take_along_axis(z, l[:, None, :, :], axis=1)[:, 0]  # (B, H, W)
    ref = jnp.sum(jnp.where(condition, z_sel, 0.0))
    assert jnp.allclose(loss, ref, rtol=1e-5, atol=1e-4), (loss, ref)

    print("KERNEL_OK")
</pallas_src>

<mosaic_0001>
module attributes {stable_mosaic.version = 11 : i64} {
  func.func @_untargeted_loss_kernel(%arg0: i32, %arg1: i32, %arg2: memref<1x4x256xf32, #tpu.memory_space<vmem>>, %arg3: memref<1x1x256xi8, #tpu.memory_space<vmem>>, %arg4: memref<1x1x8x128xf32, #tpu.memory_space<vmem>>) attributes {dimension_semantics = [#tpu.dimension_semantics<parallel>, #tpu.dimension_semantics<parallel>], iteration_bounds = array<i64: 2, 1>, scalar_prefetch = 0 : i64, scratch_operands = 0 : i64, tpu.core_type = #tpu.core_type<tc>, window_params = [{transform_indices = @transform_0, window_bounds = array<i64: 1, 4, 256>}, {transform_indices = @transform_1, window_bounds = array<i64: 1, 1, 256>}, {transform_indices = @transform_2, window_bounds = array<i64: 1, 1, 8, 128>}]} {
    %c0 = arith.constant 0 : index
    %c0_0 = arith.constant 0 : index
    %c0_1 = arith.constant 0 : index
    %0 = vector.load %arg3[%c0, %c0_0, %c0_1] : memref<1x1x256xi8, #tpu.memory_space<vmem>>, vector<1x1x256xi8>
    %1 = vector.shape_cast %0 : vector<1x1x256xi8> to vector<1x256xi8>
    %2 = arith.extsi %1 : vector<1x256xi8> to vector<1x256xi32>
    %cst = arith.constant 0.000000e+00 : f32
    %3 = vector.broadcast %cst : f32 to vector<1x256xf32>
    %c0_2 = arith.constant 0 : index
    %c0_3 = arith.constant 0 : index
    %c0_4 = arith.constant 0 : index
    %4 = vector.load %arg2[%c0_2, %c0_3, %c0_4] : memref<1x4x256xf32, #tpu.memory_space<vmem>>, vector<1x4x256xf32>
    %5 = vector.shape_cast %4 : vector<1x4x256xf32> to vector<4x256xf32>
    %6 = tpu.iota {dimensions = array<i32: 0>} : vector<4x256xi32>
    %c0_i32 = arith.constant 0 : i32
    %7 = vector.broadcast %c0_i32 : i32 to vector<4x256xi32>
    %8 = arith.addi %7, %6 : vector<4x256xi32>
    %9 = vector.broadcast %2 : vector<1x256xi32> to vector<4x256xi32>
    %10 = arith.cmpi eq, %8, %9 : vector<4x256xi32>
    %cst_5 = arith.constant 0.000000e+00 : f32
    %11 = vector.broadcast %cst_5 : f32 to vector<4x256xf32>
    %12 = arith.select %10, %5, %11 : vector<4x256xi1>, vector<4x256xf32>
    %cst_6 = arith.constant dense<0.000000e+00> : vector<256xf32>
    %13 = vector.multi_reduction <add>, %12, %cst_6 [0] : vector<4x256xf32> to vector<256xf32>
    %14 = vector.shape_cast %13 : vector<256xf32> to vector<1x256xf32>
    %15 = arith.addf %3, %14 : vector<1x256xf32>
    %16 = vector.extract_strided_slice %15 {offsets = [0, 0], sizes = [1, 128], strides = [1, 1]} : vector<1x256xf32> to vector<1x128xf32>
    %17 = vector.extract_strided_slice %15 {offsets = [0, 128], sizes = [1, 128], strides = [1, 1]} : vector<1x256xf32> to vector<1x128xf32>
    %18 = arith.addf %16, %17 : vector<1x128xf32>
    %19 = tpu.iota {dimensions = array<i32: 0>} : vector<8x128xi32>
    %c0_i32_7 = arith.constant 0 : i32
    %20 = vector.broadcast %c0_i32_7 : i32 to vector<8x128xi32>
    %21 = arith.cmpi eq, %19, %20 : vector<8x128xi32>
    %cst_8 = arith.constant 0.000000e+00 : f32
    %22 = vector.broadcast %cst_8 : f32 to vector<8x128xf32>
    %23 = vector.shape_cast %18 : vector<1x128xf32> to vector<1x128xf32>
    %24 = vector.broadcast %23 : vector<1x128xf32> to vector<8x128xf32>
    %25 = arith.select %21, %24, %22 : vector<8x128xi1>, vector<8x128xf32>
    %c0_9 = arith.constant 0 : index
    %c0_10 = arith.constant 0 : index
    %c0_11 = arith.constant 0 : index
    %c0_12 = arith.constant 0 : index
    %26 = vector.load %arg4[%c0_9, %c0_10, %c0_11, %c0_12] : memref<1x1x8x128xf32, #tpu.memory_space<vmem>>, vector<1x1x8x128xf32>
    %27 = vector.shape_cast %26 : vector<1x1x8x128xf32> to vector<8x128xf32>
    %28 = vector.shape_cast %25 : vector<8x128xf32> to vector<1x1x8x128xf32>
    tpu.vector_store %arg4[%c0_9, %c0_10, %c0_11, %c0_12], %28 {strides = array<i32>} : memref<1x1x8x128xf32, #tpu.memory_space<vmem>>, vector<1x1x8x128xf32>,
    return
  }
  func.func @transform_0(%arg0: i32, %arg1: i32) -> (i32, i32, i32) {
    %c0_i32 = arith.constant 0 : i32
    %c0_i32_0 = arith.constant 0 : i32
    return %arg0, %c0_i32, %arg1 : i32, i32, i32
  }
  func.func @transform_1(%arg0: i32, %arg1: i32) -> (i32, i32, i32) {
    %c0_i32 = arith.constant 0 : i32
    %c0_i32_0 = arith.constant 0 : i32
    return %arg0, %c0_i32, %arg1 : i32, i32, i32
  }
  func.func @transform_2(%arg0: i32, %arg1: i32) -> (i32, i32, i32, i32) {
    %c0_i32 = arith.constant 0 : i32
    %c0_i32_0 = arith.constant 0 : i32
    %c0_i32_1 = arith.constant 0 : i32
    return %arg0, %arg1, %c0_i32, %c0_i32_0 : i32, i32, i32, i32
  }
}

</mosaic_0001>

<llo_original>
// kernel: untargeted_loss.1
$region0: #{untargeted_loss.1}
  #allocation0 [shape = 'u32[]', space=smem, size = 0x4, offset = 0x4, fixed_abs, tag = 'smem constant byte address 0x4 - core index']
  #allocation1 [shape = 'u32[144,128]{1,0:T(1,128)}', space=vmem, size = 0x12000, scoped, tag = 'internal scratch']
  %s0 = inlined_call_operand.vmem [shape: f32[2,4,256], index: 0, kind: input, shape index: {}]
  %s1 = inlined_call_operand.vmem [shape: s8[2,1,256], index: 1, kind: input, shape index: {}]
  %s2 = inlined_call_operand.vmem [shape: f32[2,1,8,128], index: 2, kind: output, shape index: {}]
  %s3 = sld [smem:[#allocation0]]
  $region41: #{untargeted_loss.1} parent=0
    _
  %s5 = ssub.s32 1, %s3
  %s6 = scalar_select 0, %s5, %s3
  loop: start=0, step=1, limit=4
  $region2: #{untargeted_loss.1} parent=0 // loop_pre_header
    _
  $region3: #{untargeted_loss.1} parent=0 // loop_header
    %s8 = sphi 0, %s12
    %p9 = scmp.ge.s32.totalorder %s8, 4
    %s15 = sphi 0, %s27
    %s16 = sphi 0, %s23
    %s17 = sphi 0, %s15
    %s18 = sphi 0, %s16
    %s19 = sphi 0, %s17
    %s20 = sphi 0, %s18
    %s32 = sphi 0, %s34
    %s35 = sphi 0, %s32
    %s36 = sphi 0, %s35
    %s52 = sphi 0, %s36
    %s60 = sphi 0, %s62
    %s63 = sphi 0, %s60
    %s64 = sphi 0, %s63
    %s80 = sphi 0, %s64
    %s88 = sphi 0, %s90
    %s91 = sphi 0, %s88
    %s92 = sphi 0, %s91
    %s108 = sphi 0, %s92
  $region4: #{untargeted_loss.1} parent=0 // loop_header_branch
    %11 = sbr.rel (%p9) target = $region8
  $region5: #{untargeted_loss.1} parent=0 // loop_body
    %s13 = ssub.s32 %s8, 1
    %s14 = ssub.s32 %s8, 2
    %s21 = sadd.s32 1, %s16
    %p22 = scmp.ge.s32.totalorder %s21, 1
    %s23 = scalar_select %p22, 0, %s21
    %s24 = sadd.s32 1, %s15
    %s25 = scalar_select %p22, %s24, %s15
    %p26 = scmp.ge.s32.totalorder %s25, 2
    %s27 = scalar_select %p26, 0, %s25
    %s28 = ssub.s32 %s15, %s27
    %s29 = ssub.s32 %s16, %s23
    %s30 = sor.u32 %s28, %s29
    %p31 = scmp.eq.s32.totalorder %s30, 0
    %s33 = sadd.s32 %s32, 1
    %s34 = scalar_select %p31, %s32, %s33
    %p37 = pneg %p31
    %p38 = scmp.eq.s32.totalorder %s8, 1
    %p39 = por %p37, %p38
    %p40 = scmp.ne.s32.totalorder %s32, %s35
    %p41 = scmp.eq.s32.totalorder %s8, 0
    %p42 = por %p40, %p41
    %p43 = scmp.ne.s32.totalorder %s32, %s35
    %p44 = scmp.eq.s32.totalorder %s13, 1
    %p45 = por %p43, %p44
    %p46 = scmp.ne.s32.totalorder %s35, %s36
    %p47 = scmp.eq.s32.totalorder %s13, 0
    %p48 = por %p46, %p47
    %p49 = scmp.ne.s32.totalorder %s35, %s36
    %p50 = scmp.eq.s32.totalorder %s14, 1
    %p51 = por %p49, %p50
    %p53 = scmp.ne.s32.totalorder %s36, %s52
    %p54 = scmp.eq.s32.totalorder %s14, 0
    %p55 = por %p53, %p54
    %s56 = ssub.s32 %s15, %s27
    %s57 = ssub.s32 %s16, %s23
    %s58 = sor.u32 %s56, %s57
    %p59 = scmp.eq.s32.totalorder %s58, 0
    %s61 = sadd.s32 %s60, 1
    %s62 = scalar_select %p59, %s60, %s61
    %p65 = pneg %p59
    %p66 = scmp.eq.s32.totalorder %s8, 1
    %p67 = por %p65, %p66
    %p68 = scmp.ne.s32.totalorder %s60, %s63
    %p69 = scmp.eq.s32.totalorder %s8, 0
    %p70 = por %p68, %p69
    %p71 = scmp.ne.s32.totalorder %s60, %s63
    %p72 = scmp.eq.s32.totalorder %s13, 1
    %p73 = por %p71, %p72
    %p74 = scmp.ne.s32.totalorder %s63, %s64
    %p75 = scmp.eq.s32.totalorder %s13, 0
    %p76 = por %p74, %p75
    %p77 = scmp.ne.s32.totalorder %s63, %s64
    %p78 = scmp.eq.s32.totalorder %s14, 1
    %p79 = por %p77, %p78
    %p81 = scmp.ne.s32.totalorder %s64, %s80
    %p82 = scmp.eq.s32.totalorder %s14, 0
    %p83 = por %p81, %p82
    %s84 = ssub.s32 %s15, %s27
    %s85 = ssub.s32 %s16, %s23
    %s86 = sor.u32 %s84, %s85
    %p87 = scmp.eq.s32.totalorder %s86, 0
    %s89 = sadd.s32 %s88, 1
    %s90 = scalar_select %p87, %s88, %s89
    %p93 = pneg %p87
    %p94 = scmp.eq.s32.totalorder %s8, 1
    %p95 = por %p93, %p94
    %p96 = scmp.ne.s32.totalorder %s88, %s91
    %p97 = scmp.eq.s32.totalorder %s8, 0
    %p98 = por %p96, %p97
    %p99 = scmp.ne.s32.totalorder %s88, %s91
    %p100 = scmp.eq.s32.totalorder %s13, 1
    %p101 = por %p99, %p100
    %p102 = scmp.ne.s32.totalorder %s91, %s92
    %p103 = scmp.eq.s32.totalorder %s13, 0
    %p104 = por %p102, %p103
    %p105 = scmp.ne.s32.totalorder %s91, %s92
    %p106 = scmp.eq.s32.totalorder %s14, 1
    %p107 = por %p105, %p106
    %p109 = scmp.ne.s32.totalorder %s92, %s108
    %p110 = scmp.eq.s32.totalorder %s14, 0
    %p111 = por %p109, %p110
    %p112 = scmp.le.s32.totalorder 1, %s8
    %p113 = scmp.lt.s32.totalorder %s8, 3
    %p114 = pnand %p112, %p113
    %p115 = pneg %p114
    // Predicated region
    $region9: #{untargeted_loss.1} parent=5 // pred_check
      _
    $region10: #{untargeted_loss.1} parent=5 // pred_check_branch
      %117 = sbr.rel (%p114) target = $region12
    $region11: #{untargeted_loss.1} parent=5 // pred_region
      %s118 = ssub.s32 %s8, 1
    $region12: #{untargeted_loss.1} parent=5 // pred_fallthru
      _
    %p119 = scmp.lt.s32.totalorder %s8, 2
    // Predicated region
    $region13: #{untargeted_loss.1} parent=5 // pred_check
      %p120 = pneg %p119
    $region14: #{untargeted_loss.1} parent=5 // pred_check_branch
      %122 = sbr.rel (%p120) target = $region16
    $region15: #{untargeted_loss.1} parent=5 // pred_region
      // Predicated region
      $region17: #{untargeted_loss.1} parent=15 // pred_check
        %p123 = pneg %p42
      $region18: #{untargeted_loss.1} parent=15 // pred_check_branch
        %125 = sbr.rel (%p123) target = $region20
      $region19: #{untargeted_loss.1} parent=15 // pred_region
        %s126 = smul.u32 2, %s16
        %p127 = scmp.lt.s32.totalorder %s15, 1
        %s128 = scalar_select %p127, %s15, 1
        %p129 = scmp.lt.s32.totalorder %s126, 1
        %s130 = scalar_select %p129, %s126, 1
        %s131 = smul.addr %s128, 2
        %s132 = sadd.s32 %s130, %s131
        %s133 = smul.addr %s132, 4
        %s134 = scalar_lea.vmem %s0, %s133
        %s135 = smul.u32 2, %s16
      $region20: #{untargeted_loss.1} parent=15 // pred_fallthru
        _
      // Predicated region
      $region21: #{untargeted_loss.1} parent=15 // pred_check
        %p136 = pneg %p70
      $region22: #{untargeted_loss.1} parent=15 // pred_check_branch
        %138 = sbr.rel (%p136) target = $region24
      $region23: #{untargeted_loss.1} parent=15 // pred_region
        %s139 = smul.u32 2, %s16
        %p140 = scmp.lt.s32.totalorder %s15, 1
        %s141 = scalar_select %p140, %s15, 1
        %p142 = scmp.lt.s32.totalorder %s139, 1
        %s143 = scalar_select %p142, %s139, 1
        %s144 = smul.addr %s141, 2
        %s145 = sadd.s32 %s143, %s144
        %s146 = scalar_lea.vmem %s1, %s145
        %s147 = smul.u32 2, %s16
      $region24: #{untargeted_loss.1} parent=15 // pred_fallthru
        _
    $region16: #{untargeted_loss.1} parent=5 // pred_fallthru
      _
    %p148 = scmp.le.s32.totalorder 1, %s8
    %p149 = scmp.lt.s32.totalorder %s8, 3
    %p150 = pnand %p148, %p149
    %p151 = pneg %p150
    // Predicated region
    $region25: #{untargeted_loss.1} parent=5 // pred_check
      _
    $region26: #{untargeted_loss.1} parent=5 // pred_check_branch
      %153 = sbr.rel (%p150) target = $region28
    $region27: #{untargeted_loss.1} parent=5 // pred_region
      %s154 = ssub.s32 %s8, 1
      %s155 = smul.u32 2, %s18
      %p156 = scmp.lt.s32.totalorder %s17, 1
      %s157 = scalar_select %p156, %s17, 1
      %p158 = scmp.lt.s32.totalorder %s155, 1
      %s159 = scalar_select %p158, %s155, 1
      %s160 = smul.addr %s157, 2
      %s161 = sadd.s32 %s159, %s160
      %s162 = smul.addr %s161, 4
      %s163 = scalar_lea.vmem %s0, %s162
      %p164 = pneg %p48
      %p165 = pneg %p45
      %s166 = smul.u32 2, %s18
      %p167 = scmp.lt.s32.totalorder %s17, 1
      %s168 = scalar_select %p167, %s17, 1
      %p169 = scmp.lt.s32.totalorder %s166, 1
      %s170 = scalar_select %p169, %s166, 1
      %s171 = smul.addr %s168, 2
      %s172 = sadd.s32 %s170, %s171
      %s173 = scalar_lea.vmem %s1, %s172
      %p174 = pneg %p76
      %p175 = pneg %p73
      %p176 = pneg %p104
      %p177 = pneg %p101
      %p178 = scmp.lt.s32.totalorder %s17, 1
      %s179 = scalar_select %p178, %s17, 1
      %p180 = scmp.lt.s32.totalorder %s18, 0
      %s181 = scalar_select %p180, %s18, 0
      %s182 = sadd.s32 %s181, %s179
      %s183 = smul.addr %s182, 8
      %s184 = scalar_lea.vmem %s2, %s183
      %s185 = smul.u32 2, %s18
      %p186 = scmp.lt.s32.totalorder %s17, 1
      %s187 = scalar_select %p186, %s17, 1
      %p188 = scmp.lt.s32.totalorder %s185, 1
      %s189 = scalar_select %p188, %s185, 1
      %s190 = smul.addr %s187, 2
      %s191 = sadd.s32 %s189, %s190
      %s192 = smul.addr %s191, 4
      %s193 = scalar_lea.vmem %s0, %s192
      %s194 = smul.u32 2, %s18
      %s195 = smul.u32 2, %s18
      %p196 = scmp.lt.s32.totalorder %s17, 1
      %s197 = scalar_select %p196, %s17, 1
      %p198 = scmp.lt.s32.totalorder %s195, 1
      %s199 = scalar_select %p198, %s195, 1
      %s200 = smul.addr %s197, 2
      %s201 = sadd.s32 %s199, %s200
      %s202 = scalar_lea.vmem %s1, %s201
      %s203 = smul.u32 2, %s18
      %p204 = scmp.lt.s32.totalorder %s17, 1
      %s205 = scalar_select %p204, %s17, 1
      %p206 = scmp.lt.s32.totalorder %s18, 0
      %s207 = scalar_select %p206, %s18, 0
      %s208 = sadd.s32 %s207, %s205
      %s209 = smul.addr %s208, 8
      %s210 = scalar_lea.vmem %s2, %s209
      %v211 = vld [vmem:[%s202] sm:$0x3]
      %v212 = vunpack.c.0.s8 %v211
      %v213 = vld [vmem:[%s193] sm:$0xff]
      %v214 = vlaneseq
      %v215 = vshrl.u32 %v214, 7
      %v216 = vlaneseq
      %v217 = vshrl.u32 %v216, 7
      %v218 = vsub.s32 0, %v217
      %v219 = vrot.slane %v212, %v218
      %v220 = vlaneseq
      %v221 = vshrl.u32 %v220, 7
      %v222 = vsub.s32 4, %v221
      %v223 = vrot.slane %v212, %v222
      %v224 = vlaneseq
      %v225 = vshrl.u32 %v224, 7
      %v226 = vsub.s32 0, %v225
      %v227 = vrot.slane %v219, %v226
      %v228 = vlaneseq
      %v229 = vshrl.u32 %v228, 7
      %v230 = vsub.s32 0, %v229
      %v231 = vrot.slane %v223, %v230
      %vm232 = vcmp.eq.s32.totalorder %v215, %v227
      %vm233 = vcmp.eq.s32.totalorder %v215, %v231
      %v235 = vcombine.high %v213, %v213
      %v237 = vsel %vm232, %v213, 0.0
      %v238 = vsel %vm233, %v235, 0.0
      %vm239 = vcmask 1043456
      %v240 = vsel %vm239, %v237, 0.0
      %v241 = vrot.slane %v240, 4
      %v242 = vadd.f32 %v240, %v241
      %v243 = vrot.slane %v242, 2
      %v244 = vadd.f32 %v242, %v243
      %v245 = vrot.slane %v244, 1
      %v246 = vadd.f32 %v244, %v245
      %v247 = vsel %vm239, %v238, 0.0
      %v248 = vrot.slane %v247, 4
      %v249 = vadd.f32 %v247, %v248
      %v250 = vrot.slane %v249, 2
      %v251 = vadd.f32 %v249, %v250
      %v252 = vrot.slane %v251, 1
      %v253 = vadd.f32 %v251, %v252
      %v254 = vadd.f32 %v246, 0.0
      %v255 = vadd.f32 %v253, 0.0
      %v256 = vadd.f32 %v254, %v255
      %vm257 = vcmp.eq.s32.totalorder %v215, 0
      %v258 = vsel %vm257, %v256, 0.0
      %259 = vst [vmem:[%s210] sm:$0xff] %v258
      %p260 = scmp.lt.s32.totalorder %s17, 1
      %s261 = scalar_select %p260, %s17, 1
      %p262 = scmp.lt.s32.totalorder %s18, 0
      %s263 = scalar_select %p262, %s18, 0
      %s264 = sadd.s32 %s263, %s261
      %s265 = smul.addr %s264, 8
      %s266 = scalar_lea.vmem %s2, %s265
      // Predicated region
      $region29: #{untargeted_loss.1} parent=27 // pred_check
        %p267 = pneg %p101
      $region30: #{untargeted_loss.1} parent=27 // pred_check_branch
        %269 = sbr.rel (%p267) target = $region32
      $region31: #{untargeted_loss.1} parent=27 // pred_region
        _
      $region32: #{untargeted_loss.1} parent=27 // pred_fallthru
        _
    $region28: #{untargeted_loss.1} parent=5 // pred_fallthru
      _
    %p270 = scmp.le.s32.totalorder 2, %s8
    // Predicated region
    $region33: #{untargeted_loss.1} parent=5 // pred_check
      %p271 = pneg %p270
    $region34: #{untargeted_loss.1} parent=5 // pred_check_branch
      %273 = sbr.rel (%p271) target = $region36
    $region35: #{untargeted_loss.1} parent=5 // pred_region
      %s274 = ssub.s32 %s8, 2
      // Predicated region
      $region37: #{untargeted_loss.1} parent=35 // pred_check
        %p275 = pneg %p107
      $region38: #{untargeted_loss.1} parent=35 // pred_check_branch
        %277 = sbr.rel (%p275) target = $region40
      $region39: #{untargeted_loss.1} parent=35 // pred_region
        %p278 = scmp.lt.s32.totalorder %s19, 1
        %s279 = scalar_select %p278, %s19, 1
        %p280 = scmp.lt.s32.totalorder %s20, 0
        %s281 = scalar_select %p280, %s20, 0
        %s282 = sadd.s32 %s281, %s279
        %s283 = smul.addr %s282, 8
        %s284 = scalar_lea.vmem %s2, %s283
      $region40: #{untargeted_loss.1} parent=35 // pred_fallthru
        _
    $region36: #{untargeted_loss.1} parent=5 // pred_fallthru
      _
  $region6: #{untargeted_loss.1} parent=0 // loop_footer
    %s12 = sadd.s32 1, %s8
  $region7: #{untargeted_loss.1} parent=0 // loop_footer_branch
    %7 = sbr.rel target = $region3
  $region8: #{untargeted_loss.1} parent=0 // loop_exit
    _

</llo_original>
